<compile_context>
chip_gen: v6e
topology: v6e:2x2x1
jax: 0.10.0
libtpu: 0.0.40
codegen_flags: <defaults>
</compile_context>

<pallas_src>
import functools

import jax
import jax.numpy as jnp
from jax.experimental import pallas as pl
from jax.experimental.pallas import tpu as pltpu

LOG_MAX = 2.0
LOG_MIN = -20.0

_MAX_BATCH_TILE = 1024   # rows per grid step for large batches (multiple of 8)
_SINGLE_STEP_MAX = 256   # at or below this, one grid step (per-step overhead wins)


def _round_up(x, m):
    return ((x + m - 1) // m) * m


def _choose_batch_tile(batch):
    """Batch tile: one step for small batches; >=2 steps (v7x megacore) otherwise."""
    if batch <= _SINGLE_STEP_MAX:
        return batch
    half = -(-batch // 2)                       # ceil(batch / 2)
    return min(_MAX_BATCH_TILE, _round_up(half, 8))


def _sac_actor_kernel(state_ref, slab_ref, out_ref, *,
                      obs_rows, lanes, out_lanes, act,
                      r_w1, r_w2, r_head, r_b, action_loc, action_scale):
    """One batch tile: 3 lane-dense MXU matmuls + ReLU/clip + fused exp/tanh.

    All weight sub-views are static, (8,128)-tile-aligned slices of one packed
    parameter slab (zero-cost views).  The head weight block already places
    duplicated mu / log_std columns at the final output lane offsets, so the
    single lane-packed output plane is built with plain VPU selects.
    """
    x = state_ref[...]                                    # (TB, obs_rows)

    w1 = slab_ref[r_w1:r_w1 + obs_rows, :]                # (obs_rows, LANES)
    w2 = slab_ref[r_w2:r_w2 + lanes, :]                   # (LANES,    LANES)
    wh = slab_ref[r_head:r_head + lanes, 0:out_lanes]     # (LANES, OUT_LANES)
    b_blk = slab_ref[r_b:r_b + 8, :]                      # (8, LANES) aligned tile
    b1 = b_blk[0:1, :]
    b2 = b_blk[1:2, :]
    bh = b_blk[2:3, 0:out_lanes]

    h1 = jnp.maximum(jnp.dot(x, w1, preferred_element_type=jnp.float32) + b1, 0.0)
    h2 = jnp.maximum(jnp.dot(h1, w2, preferred_element_type=jnp.float32) + b2, 0.0)
    # Fused head: lanes [0:act)=mu, [act:2act)=log_std, [2act:3act)=log_std(dup),
    # [3act:4act)=mu(dup); remaining lanes are exactly zero (zero-padded weights).
    head = jnp.dot(h2, wh, preferred_element_type=jnp.float32) + bh

    clipped = jnp.clip(head, LOG_MIN, LOG_MAX)
    std = jnp.exp(clipped)                                # EUP slot (~free)
    # Faithful to the PyTorch source: `self.loc * tanh(mu) + self.scale`
    # (with default loc=0, scale=1 this is the constant 1.0 — reproduced verbatim).
    mean_act = action_loc * jnp.tanh(head) + action_scale

    lane = jax.lax.broadcasted_iota(jnp.int32, head.shape, 1)
    out = jnp.where(lane < act, head,                     # mu
          jnp.where(lane < 2 * act, clipped,              # log_std (already in place)
          jnp.where(lane < 3 * act, std,                  # exp(log_std) via dup lanes
                    mean_act)))                           # tanh(mu) via dup lanes
    out_ref[...] = out                                    # one lane-dense vst plane


def pack_sac_actor_params(params, *, observation_dim, action_dim, hidden):
    """Packs (w1,b1,w2,b2,w3,b3) into one zero-padded (rows, LANES) f32 slab (offline).

    Row layout (every block starts on an 8-row boundary, full 128-lane width):
      [r_w1  : r_w1+obs_rows)  W1 (obs,h1)          in lanes [0,h1)
      [r_w2  : r_w2+LANES)     W2 (h1,h2)           in rows [0,h1), lanes [0,h2)
      [r_head: r_head+LANES)   fused W3 head: lanes [0:act)=mu cols, [act:2act)=
                               log_std cols, [2act:3act)=log_std dup, [3act:4act)=mu dup
      [r_b   : r_b+8)          row0=b1, row1=b2, row2=fused head bias (same lane layout)
    Zero padding keeps the math exact (ReLU(0)=0, padded weight rows/cols are 0).
    """
    w1, b1, w2, b2, w3, b3 = params
    h1, h2 = hidden
    act = action_dim
    lanes = _round_up(max(h1, h2, 4 * act, 1), 128)
    out_lanes = _round_up(max(4 * act, 1), 128)
    obs_rows = _round_up(observation_dim, 8)

    r_w1 = 0
    r_w2 = r_w1 + obs_rows
    r_head = r_w2 + lanes
    r_b = r_head + lanes
    total_rows = r_b + 8

    w3f = w3.astype(jnp.float32)
    b3f = b3.reshape(-1).astype(jnp.float32)
    w3_mu, w3_ls = w3f[:, :act], w3f[:, act:2 * act]
    b3_mu, b3_ls = b3f[:act], b3f[act:2 * act]

    slab = jnp.zeros((total_rows, lanes), jnp.float32)
    slab = slab.at[r_w1:r_w1 + observation_dim, 0:h1].set(w1.astype(jnp.float32))
    slab = slab.at[r_w2:r_w2 + h1, 0:h2].set(w2.astype(jnp.float32))
    slab = slab.at[r_head:r_head + h2, 0 * act:1 * act].set(w3_mu)
    slab = slab.at[r_head:r_head + h2, 1 * act:2 * act].set(w3_ls)
    slab = slab.at[r_head:r_head + h2, 2 * act:3 * act].set(w3_ls)   # dup -> std lanes
    slab = slab.at[r_head:r_head + h2, 3 * act:4 * act].set(w3_mu)   # dup -> mean_act lanes
    slab = slab.at[r_b + 0, 0:h1].set(b1.reshape(-1).astype(jnp.float32))
    slab = slab.at[r_b + 1, 0:h2].set(b2.reshape(-1).astype(jnp.float32))
    slab = slab.at[r_b + 2, 0 * act:1 * act].set(b3_mu)
    slab = slab.at[r_b + 2, 1 * act:2 * act].set(b3_ls)
    slab = slab.at[r_b + 2, 2 * act:3 * act].set(b3_ls)
    slab = slab.at[r_b + 2, 3 * act:4 * act].set(b3_mu)

    layout = dict(obs_dim=observation_dim, obs_rows=obs_rows, lanes=lanes,
                  out_lanes=out_lanes, act=act,
                  r_w1=r_w1, r_w2=r_w2, r_head=r_head, r_b=r_b)
    return slab, layout


def sac_actor_forward(state, packed_params, *, action_loc=0.0, action_scale=1.0):
    """SoftActorCritic.forward (== SoftActor.forward) in a single Pallas call.

    Returns (mu, log_std, std, mean_action).  The TransformedDistribution object
    itself has no tensor output; it is fully determined by (mu, std).
    """
    slab, lay = packed_params
    batch, obs = state.shape
    assert obs == lay["obs_dim"]
    obs_rows = lay["obs_rows"]
    lanes = lay["lanes"]
    out_lanes = lay["out_lanes"]
    act = lay["act"]

    # Keep the W1 view tile-aligned for arbitrary obs: pad feature axis to a
    # multiple of 8 (zero W1 rows there keep the math exact).  No-op for obs%8==0.
    state = state.astype(jnp.float32)
    if obs_rows != obs:
        state = jnp.pad(state, ((0, 0), (0, obs_rows - obs)))

    tb = _choose_batch_tile(batch)
    grid = (pl.cdiv(batch, tb),)   # ragged last tile handled by masked partial DMA

    kernel = functools.partial(
        _sac_actor_kernel,
        obs_rows=obs_rows, lanes=lanes, out_lanes=out_lanes, act=act,
        r_w1=lay["r_w1"], r_w2=lay["r_w2"], r_head=lay["r_head"], r_b=lay["r_b"],
        action_loc=float(action_loc), action_scale=float(action_scale))

    plane = pl.pallas_call(
        kernel,
        out_shape=jax.ShapeDtypeStruct((batch, out_lanes), jnp.float32),
        grid_spec=pltpu.PrefetchScalarGridSpec(
            num_scalar_prefetch=0,
            grid=grid,
            in_specs=[
                pl.BlockSpec((tb, obs_rows), lambda i: (i, 0)),   # state batch tile
                pl.BlockSpec(slab.shape, lambda i: (0, 0)),       # weights stay resident
            ],
            out_specs=pl.BlockSpec((tb, out_lanes), lambda i: (i, 0)),
        ),
        compiler_params=pltpu.CompilerParams(
            dimension_semantics=("parallel",)),   # megacore sharding on v7x
    )(state, slab)

    mu = plane[:, 0 * act:1 * act]
    log_std = plane[:, 1 * act:2 * act]
    std = plane[:, 2 * act:3 * act]
    mean_act = plane[:, 3 * act:4 * act]
    # TODO(synk): TransformedDistribution(Normal, [Tanh, Affine]) sampling/log_prob
    # is not a tensor op; the distribution is returned via its (mu, std) parameters.
    return mu, log_std, std, mean_act


def init_linear(key, fan_in, fan_out):
    """Deterministic init matching torch.nn.Linear default: U(-1/sqrt(fan_in), +)."""
    kw, kb = jax.random.split(key)
    bound = 1.0 / jnp.sqrt(float(fan_in))
    w = jax.random.uniform(kw, (fan_in, fan_out), jnp.float32, -bound, bound)
    b = jax.random.uniform(kb, (1, fan_out), jnp.float32, -bound, bound)
    return w, b


def _reference_forward(state, params, action_dim, loc, scale):
    """Pure-JAX reference of the PyTorch forward (for correctness checking)."""
    w1, b1, w2, b2, w3, b3 = params
    h1 = jnp.maximum(state @ w1 + b1, 0.0)
    h2 = jnp.maximum(h1 @ w2 + b2, 0.0)
    out = h2 @ w3 + b3
    mu = out[:, :action_dim]
    log_std = jnp.clip(out[:, action_dim:], LOG_MIN, LOG_MAX)
    return mu, log_std, jnp.exp(log_std), loc * jnp.tanh(mu) + scale


def _check(state, params, packed, action_dim):
    mu, log_std, std, mean_act = sac_actor_forward(
        state, packed, action_loc=0.0, action_scale=1.0)
    jax.block_until_ready((mu, log_std, std, mean_act))
    r_mu, r_ls, r_std, r_ma = _reference_forward(state, params, action_dim, 0.0, 1.0)
    b = state.shape[0]
    assert mu.shape == (b, action_dim)
    assert log_std.shape == (b, action_dim)
    assert std.shape == (b, action_dim)
    assert mean_act.shape == (b, action_dim)
    assert bool(jnp.allclose(mu, r_mu, atol=1e-4, rtol=1e-4))
    assert bool(jnp.allclose(log_std, r_ls, atol=1e-4, rtol=1e-4))
    assert bool(jnp.allclose(std, r_std, atol=1e-4, rtol=1e-4))
    assert bool(jnp.allclose(mean_act, r_ma, atol=1e-4, rtol=1e-4))
    assert bool(jnp.all(log_std >= LOG_MIN)) and bool(jnp.all(log_std <= LOG_MAX))


if __name__ == "__main__":
    # Small shapes consistent with the module: obs=16, act=4, hidden=(32,32), batch=8
    observation_dim = 16
    action_dim = 4
    hidden = (32, 32)
    batch = 8

    key = jax.random.PRNGKey(0)
    k_state, k_state2, k1, k2, k3 = jax.random.split(key, 5)

    state = jax.random.normal(k_state, (batch, observation_dim), jnp.float32)

    w1, b1 = init_linear(k1, observation_dim, hidden[0])
    w2, b2 = init_linear(k2, hidden[0], hidden[1])
    w3, b3 = init_linear(k3, hidden[1], 2 * action_dim)
    params = (w1, b1, w2, b2, w3, b3)

    packed = pack_sac_actor_params(
        params, observation_dim=observation_dim, action_dim=action_dim, hidden=hidden)

    # Single-tile path (demo batch).
    _check(state, params, packed, action_dim)

    # Multi-step + ragged-last-tile path (2 grid steps, masked partial tile).
    state_big = jax.random.normal(k_state2, (300, observation_dim), jnp.float32)
    _check(state_big, params, packed, action_dim)

    print("KERNEL_OK")
</pallas_src>

<mosaic_0001>
module attributes {stable_mosaic.version = 11 : i64} {
  func.func @_sac_actor_kernel(%arg0: i32, %arg1: memref<8x16xf32, #tpu.memory_space<vmem>>, %arg2: memref<280x128xf32, #tpu.memory_space<vmem>>, %arg3: memref<8x128xf32, #tpu.memory_space<vmem>>) attributes {dimension_semantics = [#tpu.dimension_semantics<parallel>], iteration_bounds = array<i64: 1>, scalar_prefetch = 0 : i64, scratch_operands = 0 : i64, tpu.core_type = #tpu.core_type<tc>, window_params = [{transform_indices = @transform_0, window_bounds = array<i64: 8, 16>}, {pipeline_mode = #tpu.pipeline_mode<synchronous>, transform_indices = @transform_1, window_bounds = array<i64: 280, 128>}, {transform_indices = @transform_2, window_bounds = array<i64: 8, 128>}]} {
    %c0 = arith.constant 0 : index
    %c0_0 = arith.constant 0 : index
    %0 = vector.load %arg1[%c0, %c0_0] : memref<8x16xf32, #tpu.memory_space<vmem>>, vector<8x16xf32>
    %c0_1 = arith.constant 0 : index
    %c0_2 = arith.constant 0 : index
    %1 = vector.load %arg2[%c0_1, %c0_2] : memref<280x128xf32, #tpu.memory_space<vmem>>, vector<16x128xf32>
    %c16 = arith.constant 16 : index
    %c0_3 = arith.constant 0 : index
    %2 = vector.load %arg2[%c16, %c0_3] : memref<280x128xf32, #tpu.memory_space<vmem>>, vector<128x128xf32>
    %c144 = arith.constant 144 : index
    %c0_4 = arith.constant 0 : index
    %3 = vector.load %arg2[%c144, %c0_4] : memref<280x128xf32, #tpu.memory_space<vmem>>, vector<128x128xf32>
    %c272 = arith.constant 272 : index
    %c0_5 = arith.constant 0 : index
    %4 = vector.load %arg2[%c272, %c0_5] : memref<280x128xf32, #tpu.memory_space<vmem>>, vector<8x128xf32>
    %5 = vector.extract_strided_slice %4 {offsets = [0, 0], sizes = [1, 128], strides = [1, 1]} : vector<8x128xf32> to vector<1x128xf32>
    %6 = vector.extract_strided_slice %4 {offsets = [1, 0], sizes = [1, 128], strides = [1, 1]} : vector<8x128xf32> to vector<1x128xf32>
    %7 = vector.extract_strided_slice %4 {offsets = [2, 0], sizes = [1, 128], strides = [1, 1]} : vector<8x128xf32> to vector<1x128xf32>
    %cst = arith.constant dense<0.000000e+00> : vector<8x128xf32>
    %8 = tpu.matmul %0, %1, %cst {dimension_numbers = #tpu.dot_dimension_numbers<[1], [0], [0], [1], [0, 0, 1, 1], [], []>} : vector<8x16xf32>, vector<16x128xf32>, vector<8x128xf32> -> vector<8x128xf32>
    %9 = vector.broadcast %5 : vector<1x128xf32> to vector<8x128xf32>
    %10 = arith.addf %8, %9 : vector<8x128xf32>
    %cst_6 = arith.constant 0.000000e+00 : f32
    %11 = vector.broadcast %cst_6 : f32 to vector<8x128xf32>
    %12 = arith.maximumf %10, %11 : vector<8x128xf32>
    %cst_7 = arith.constant dense<0.000000e+00> : vector<8x128xf32>
    %13 = tpu.matmul %12, %2, %cst_7 {dimension_numbers = #tpu.dot_dimension_numbers<[1], [0], [0], [1], [0, 0, 1, 1], [], []>} : vector<8x128xf32>, vector<128x128xf32>, vector<8x128xf32> -> vector<8x128xf32>
    %14 = vector.broadcast %6 : vector<1x128xf32> to vector<8x128xf32>
    %15 = arith.addf %13, %14 : vector<8x128xf32>
    %cst_8 = arith.constant 0.000000e+00 : f32
    %16 = vector.broadcast %cst_8 : f32 to vector<8x128xf32>
    %17 = arith.maximumf %15, %16 : vector<8x128xf32>
    %cst_9 = arith.constant dense<0.000000e+00> : vector<8x128xf32>
    %18 = tpu.matmul %17, %3, %cst_9 {dimension_numbers = #tpu.dot_dimension_numbers<[1], [0], [0], [1], [0, 0, 1, 1], [], []>} : vector<8x128xf32>, vector<128x128xf32>, vector<8x128xf32> -> vector<8x128xf32>
    %19 = vector.broadcast %7 : vector<1x128xf32> to vector<8x128xf32>
    %20 = arith.addf %18, %19 : vector<8x128xf32>
    %cst_10 = arith.constant -2.000000e+01 : f32
    %cst_11 = arith.constant 2.000000e+00 : f32
    %21 = vector.broadcast %cst_10 : f32 to vector<8x128xf32>
    %22 = arith.maximumf %21, %20 : vector<8x128xf32>
    %23 = vector.broadcast %cst_11 : f32 to vector<8x128xf32>
    %24 = arith.minimumf %23, %22 : vector<8x128xf32>
    %25 = math.exp %24 : vector<8x128xf32>
    %26 = math.tanh %20 : vector<8x128xf32>
    %cst_12 = arith.constant 0.000000e+00 : f32
    %27 = vector.broadcast %cst_12 : f32 to vector<8x128xf32>
    %28 = arith.mulf %27, %26 : vector<8x128xf32>
    %cst_13 = arith.constant 1.000000e+00 : f32
    %29 = vector.broadcast %cst_13 : f32 to vector<8x128xf32>
    %30 = arith.addf %28, %29 : vector<8x128xf32>
    %31 = tpu.iota {dimensions = array<i32: 1>} : vector<8x128xi32>
    %c4_i32 = arith.constant 4 : i32
    %32 = vector.broadcast %c4_i32 : i32 to vector<8x128xi32>
    %33 = arith.cmpi slt, %31, %32 : vector<8x128xi32>
    %c8_i32 = arith.constant 8 : i32
    %34 = vector.broadcast %c8_i32 : i32 to vector<8x128xi32>
    %35 = arith.cmpi slt, %31, %34 : vector<8x128xi32>
    %c12_i32 = arith.constant 12 : i32
    %36 = vector.broadcast %c12_i32 : i32 to vector<8x128xi32>
    %37 = arith.cmpi slt, %31, %36 : vector<8x128xi32>
    %38 = arith.select %37, %25, %30 : vector<8x128xi1>, vector<8x128xf32>
    %39 = arith.select %35, %24, %38 : vector<8x128xi1>, vector<8x128xf32>
    %40 = arith.select %33, %20, %39 : vector<8x128xi1>, vector<8x128xf32>
    %c0_14 = arith.constant 0 : index
    %c0_15 = arith.constant 0 : index
    %41 = vector.load %arg3[%c0_14, %c0_15] : memref<8x128xf32, #tpu.memory_space<vmem>>, vector<8x128xf32>
    tpu.vector_store %arg3[%c0_14, %c0_15], %40 {strides = array<i32>} : memref<8x128xf32, #tpu.memory_space<vmem>>, vector<8x128xf32>,
    return
  }
  func.func @transform_0(%arg0: i32) -> (i32, i32) {
    %c0_i32 = arith.constant 0 : i32
    %c0_i32_0 = arith.constant 0 : i32
    return %arg0, %c0_i32 : i32, i32
  }
  func.func @transform_1(%arg0: i32) -> (i32, i32) {
    %c0_i32 = arith.constant 0 : i32
    %c0_i32_0 = arith.constant 0 : i32
    %c0_i32_1 = arith.constant 0 : i32
    return %c0_i32, %c0_i32_0 : i32, i32
  }
  func.func @transform_2(%arg0: i32) -> (i32, i32) {
    %c0_i32 = arith.constant 0 : i32
    %c0_i32_0 = arith.constant 0 : i32
    return %arg0, %c0_i32 : i32, i32
  }
}

</mosaic_0001>

<llo_original>
// kernel: tpu_custom_call.1
$region0: #{tpu_custom_call.1}
  #allocation0 [shape = 'u32[]', space=smem, size = 0x4, offset = 0x4, fixed_abs, tag = 'smem constant byte address 0x4 - core index']
  #allocation1 [shape = 'u32[144,128]{1,0:T(1,128)}', space=vmem, size = 0x12000, scoped, tag = 'internal scratch']
  %s0 = inlined_call_operand.hbm [shape: f32[8,16], index: 0, kind: input, shape index: {}]
  %s1 = inlined_call_operand.hbm [shape: f32[280,128], index: 1, kind: input, shape index: {}]
  %s2 = inlined_call_operand.hbm [shape: f32[8,128], index: 2, kind: output, shape index: {}]
  %s3 = sld [smem:[#allocation0]]
  $region26: #{tpu_custom_call.1} parent=0
    _
  %s5 = ssub.s32 1, %s3
  %s6 = scalar_select 0, %s5, %s3
  $region1: #{tpu_custom_call.1} parent=0
    #allocation2 [shape = 'u8[4096]{0}', space=vmem, size = 0x1000, scoped, tag = 'input window, operand 0, single buffered']
    #allocation3 [shape = 's32[1]{0}', space=sflag, size = 0x4, scoped, tag = 'scoped memory for tpu_custom_call.1']
    #allocation4 [shape = 's32[1]{0}', space=sflag, size = 0x4, scoped, tag = 'scoped memory for tpu_custom_call.1']
    #allocation5 [shape = 'u8[143360]{0}', space=vmem, size = 0x23000, scoped, tag = 'input window, operand 1, single buffered']
    #allocation6 [shape = 's32[1]{0}', space=sflag, size = 0x4, scoped, tag = 'scoped memory for tpu_custom_call.1']
    #allocation7 [shape = 'u8[4096]{0}', space=vmem, size = 0x1000, scoped, tag = 'output window, operand 0, single buffered']
    %7 = vsyncpa [#allocation3], 0
    %8 = vsyncpa [#allocation6], 0
    %9 = vsyncpa [#allocation4], 0
    // Predicated region
    $region2: #{tpu_custom_call.1} parent=1 // pred_check
      _
    $region3: #{tpu_custom_call.1} parent=1 // pred_check_branch
      %11 = sbr.rel (0) target = $region5
    $region4: #{tpu_custom_call.1} parent=1 // pred_region
      %s13 = ssub.s32 128, 128
      %14 = vsyncadd [#allocation3], %s13
      %s16 = sshll.u32 [#allocation2], 4
      %s17 = int_to_ptr.vmem [resolvable:$true] %s16
      %19 = dma.hbm_to_vmem [thread:$0]  %s0, 128, %s17, [#allocation3]
    $region5: #{tpu_custom_call.1} parent=1 // pred_fallthru
      _
    // Predicated region
    $region6: #{tpu_custom_call.1} parent=1 // pred_check
      _
    $region7: #{tpu_custom_call.1} parent=1 // pred_check_branch
      %21 = sbr.rel (0) target = $region9
    $region8: #{tpu_custom_call.1} parent=1 // pred_region
      %s23 = ssub.s32 4480, 4480
      %24 = vsyncadd [#allocation6], %s23
      %s25 = sshll.u32 [#allocation5], 4
      %s26 = int_to_ptr.vmem [resolvable:$true] %s25
      %31 = dma.hbm_to_vmem [thread:$0]  %s1, 4480, %s26, [#allocation6], 128, 128, 8
    $region9: #{tpu_custom_call.1} parent=1 // pred_fallthru
      _
    // Predicated region
    $region10: #{tpu_custom_call.1} parent=1 // pred_check
      _
    $region11: #{tpu_custom_call.1} parent=1 // pred_check_branch
      %33 = sbr.rel (0) target = $region13
    $region12: #{tpu_custom_call.1} parent=1 // pred_region
      %34 = dma.done [#allocation3], 128
    $region13: #{tpu_custom_call.1} parent=1 // pred_fallthru
      _
    // Predicated region
    $region14: #{tpu_custom_call.1} parent=1 // pred_check
      _
    $region15: #{tpu_custom_call.1} parent=1 // pred_check_branch
      %36 = sbr.rel (0) target = $region17
    $region16: #{tpu_custom_call.1} parent=1 // pred_region
      %37 = dma.done [#allocation6], 4480
    $region17: #{tpu_custom_call.1} parent=1 // pred_fallthru
      _
    %v38 = vld [vmem:[#allocation2] sm:$0xff]
    %v39 = vld [vmem:[#allocation5] sm:$0xff]
    %v40 = vld [vmem:[#allocation5 + $0x8] sm:$0xff]
    %v41 = vld [vmem:[#allocation5 + $0x10] sm:$0xff]
    %v42 = vld [vmem:[#allocation5 + $0x18] sm:$0xff]
    %v43 = vld [vmem:[#allocation5 + $0x20] sm:$0xff]
    %v44 = vld [vmem:[#allocation5 + $0x28] sm:$0xff]
    %v45 = vld [vmem:[#allocation5 + $0x30] sm:$0xff]
    %v46 = vld [vmem:[#allocation5 + $0x38] sm:$0xff]
    %v47 = vld [vmem:[#allocation5 + $0x40] sm:$0xff]
    %v48 = vld [vmem:[#allocation5 + $0x48] sm:$0xff]
    %v49 = vld [vmem:[#allocation5 + $0x50] sm:$0xff]
    %v50 = vld [vmem:[#allocation5 + $0x58] sm:$0xff]
    %v51 = vld [vmem:[#allocation5 + $0x60] sm:$0xff]
    %v52 = vld [vmem:[#allocation5 + $0x68] sm:$0xff]
    %v53 = vld [vmem:[#allocation5 + $0x70] sm:$0xff]
    %v54 = vld [vmem:[#allocation5 + $0x78] sm:$0xff]
    %v55 = vld [vmem:[#allocation5 + $0x80] sm:$0xff]
    %v56 = vld [vmem:[#allocation5 + $0x88] sm:$0xff]
    %v57 = vld [vmem:[#allocation5 + $0x90] sm:$0xff]
    %v58 = vld [vmem:[#allocation5 + $0x98] sm:$0xff]
    %v59 = vld [vmem:[#allocation5 + $0xa0] sm:$0xff]
    %v60 = vld [vmem:[#allocation5 + $0xa8] sm:$0xff]
    %v61 = vld [vmem:[#allocation5 + $0xb0] sm:$0xff]
    %v62 = vld [vmem:[#allocation5 + $0xb8] sm:$0xff]
    %v63 = vld [vmem:[#allocation5 + $0xc0] sm:$0xff]
    %v64 = vld [vmem:[#allocation5 + $0xc8] sm:$0xff]
    %v65 = vld [vmem:[#allocation5 + $0xd0] sm:$0xff]
    %v66 = vld [vmem:[#allocation5 + $0xd8] sm:$0xff]
    %v67 = vld [vmem:[#allocation5 + $0xe0] sm:$0xff]
    %v68 = vld [vmem:[#allocation5 + $0xe8] sm:$0xff]
    %v69 = vld [vmem:[#allocation5 + $0xf0] sm:$0xff]
    %v70 = vld [vmem:[#allocation5 + $0xf8] sm:$0xff]
    %v71 = vld [vmem:[#allocation5 + $0x100] sm:$0xff]
    %v72 = vld [vmem:[#allocation5 + $0x108] sm:$0xff]
    %v73 = vld [vmem:[#allocation5 + $0x110] sm:$0xff]
    %v74 = vlaneseq
    %v75 = vshrl.u32 %v74, 7
    %v76 = vsub.s32 0, %v75
    %v77 = vrot.slane %v73, %v76
    %vm78 = vcmask 130048
    %v80 = vsel %vm78, %v38, 0
    %82 = vmatprep.subr.mxu0 0.0
    %83 = vmatpush1.msra.mxu0 0.0
    %84 = vmatprep.subr.mxu0 0.0
    %85 = vmatpush1.msra.mxu0 0.0
    %86 = vmatprep.subr.mxu0 0.0
    %87 = vmatpush1.msra.mxu0 0.0
    %88 = vmatprep.subr.mxu0 0.0
    %89 = vmatpush1.msra.mxu0 0.0
    %90 = vmatprep.subr.mxu0 0.0
    %91 = vmatpush1.msra.mxu0 0.0
    %92 = vmatprep.subr.mxu0 0.0
    %93 = vmatpush1.msra.mxu0 0.0
    %94 = vmatprep.subr.mxu0 0.0
    %95 = vmatpush1.msra.mxu0 0.0
    %96 = vmatprep.subr.mxu0 0.0
    %97 = vmatpush1.msra.mxu0 0.0
    %98 = vmatprep.subr.mxu0 0.0
    %99 = vmatpush1.msra.mxu0 0.0
    %100 = vmatprep.subr.mxu0 0.0
    %101 = vmatpush1.msra.mxu0 0.0
    %102 = vmatprep.subr.mxu0 0.0
    %103 = vmatpush1.msra.mxu0 0.0
    %104 = vmatprep.subr.mxu0 0.0
    %105 = vmatpush1.msra.mxu0 0.0
    %106 = vmatprep.subr.mxu0 0.0
    %107 = vmatpush1.msra.mxu0 0.0
    %108 = vmatprep.subr.mxu0 0.0
    %109 = vmatpush1.msra.mxu0 0.0
    %110 = vmatprep.subr.mxu0 0.0
    %111 = vmatpush1.msra.mxu0 %v40
    %112 = vmatprep.subr.mxu0 0.0
    %113 = vmatpush1.msra.mxu0 %v39
    %114 = vmatprep.subr.mxu0 0.0
    %115 = vmatpush2.msra.mxu0 0.0
    %116 = vmatprep.subr.mxu0 0.0
    %117 = vmatpush2.msra.mxu0 0.0
    %118 = vmatprep.subr.mxu0 0.0
    %119 = vmatpush2.msra.mxu0 0.0
    %120 = vmatprep.subr.mxu0 0.0
    %121 = vmatpush2.msra.mxu0 0.0
    %122 = vmatprep.subr.mxu0 0.0
    %123 = vmatpush2.msra.mxu0 0.0
    %124 = vmatprep.subr.mxu0 0.0
    %125 = vmatpush2.msra.mxu0 0.0
    %126 = vmatprep.subr.mxu0 0.0
    %127 = vmatpush2.msra.mxu0 0.0
    %128 = vmatprep.subr.mxu0 0.0
    %129 = vmatpush2.msra.mxu0 0.0
    %130 = vmatprep.subr.mxu0 0.0
    %131 = vmatpush2.msra.mxu0 0.0
    %132 = vmatprep.subr.mxu0 0.0
    %133 = vmatpush2.msra.mxu0 0.0
    %134 = vmatprep.subr.mxu0 0.0
    %135 = vmatpush2.msra.mxu0 0.0
    %136 = vmatprep.subr.mxu0 0.0
    %137 = vmatpush2.msra.mxu0 0.0
    %138 = vmatprep.subr.mxu0 0.0
    %139 = vmatpush2.msra.mxu0 0.0
    %140 = vmatprep.subr.mxu0 0.0
    %141 = vmatpush2.msra.mxu0 0.0
    %142 = vmatprep.subr.mxu0 0.0
    %143 = vmatpush2.msra.mxu0 0.0
    %144 = vmatprep.subr.mxu0 0.0
    %145 = vmatpush2.msra.mxu0 0.0
    %146 = vmatprep.mubr.f32.mxu0 0.0
    %147 = vmatmul.mubr.f32.gmra.mxu0 %v80
    %v148 = vpop.f32.mrf.mxu0
    %v149 = vadd.f32 %v77, %v148
    %v150 = vpop.f32.mrf.mxu0
    %151 = vdwg.mxu0
    %v152 = vmax.f32 %v149, 0.0
    %v153 = vlaneseq
    %v154 = vshrl.u32 %v153, 7
    %v155 = vsub.s32 1, %v154
    %v156 = vrot.slane %v73, %v155
    %157 = vmatprep.subr.mxu0 0.0
    %158 = vmatpush1.msra.mxu0 %v56
    %159 = vmatprep.subr.mxu0 0.0
    %160 = vmatpush1.msra.mxu0 %v55
    %161 = vmatprep.subr.mxu0 0.0
    %162 = vmatpush1.msra.mxu0 %v54
    %163 = vmatprep.subr.mxu0 0.0
    %164 = vmatpush1.msra.mxu0 %v53
    %165 = vmatprep.subr.mxu0 0.0
    %166 = vmatpush1.msra.mxu0 %v52
    %167 = vmatprep.subr.mxu0 0.0
    %168 = vmatpush1.msra.mxu0 %v51
    %169 = vmatprep.subr.mxu0 0.0
    %170 = vmatpush1.msra.mxu0 %v50
    %171 = vmatprep.subr.mxu0 0.0
    %172 = vmatpush1.msra.mxu0 %v49
    %173 = vmatprep.subr.mxu0 0.0
    %174 = vmatpush1.msra.mxu0 %v48
    %175 = vmatprep.subr.mxu0 0.0
    %176 = vmatpush1.msra.mxu0 %v47
    %177 = vmatprep.subr.mxu0 0.0
    %178 = vmatpush1.msra.mxu0 %v46
    %179 = vmatprep.subr.mxu0 0.0
    %180 = vmatpush1.msra.mxu0 %v45
    %181 = vmatprep.subr.mxu0 0.0
    %182 = vmatpush1.msra.mxu0 %v44
    %183 = vmatprep.subr.mxu0 0.0
    %184 = vmatpush1.msra.mxu0 %v43
    %185 = vmatprep.subr.mxu0 0.0
    %186 = vmatpush1.msra.mxu0 %v42
    %187 = vmatprep.subr.mxu0 0.0
    %188 = vmatpush1.msra.mxu0 %v41
    %189 = vmatprep.subr.mxu0 0.0
    %190 = vmatpush2.msra.mxu0 0.0
    %191 = vmatprep.subr.mxu0 0.0
    %192 = vmatpush2.msra.mxu0 0.0
    %193 = vmatprep.subr.mxu0 0.0
    %194 = vmatpush2.msra.mxu0 0.0
    %195 = vmatprep.subr.mxu0 0.0
    %196 = vmatpush2.msra.mxu0 0.0
    %197 = vmatprep.subr.mxu0 0.0
    %198 = vmatpush2.msra.mxu0 0.0
    %199 = vmatprep.subr.mxu0 0.0
    %200 = vmatpush2.msra.mxu0 0.0
    %201 = vmatprep.subr.mxu0 0.0
    %202 = vmatpush2.msra.mxu0 0.0
    %203 = vmatprep.subr.mxu0 0.0
    %204 = vmatpush2.msra.mxu0 0.0
    %205 = vmatprep.subr.mxu0 0.0
    %206 = vmatpush2.msra.mxu0 0.0
    %207 = vmatprep.subr.mxu0 0.0
    %208 = vmatpush2.msra.mxu0 0.0
    %209 = vmatprep.subr.mxu0 0.0
    %210 = vmatpush2.msra.mxu0 0.0
    %211 = vmatprep.subr.mxu0 0.0
    %212 = vmatpush2.msra.mxu0 0.0
    %213 = vmatprep.subr.mxu0 0.0
    %214 = vmatpush2.msra.mxu0 0.0
    %215 = vmatprep.subr.mxu0 0.0
    %216 = vmatpush2.msra.mxu0 0.0
    %217 = vmatprep.subr.mxu0 0.0
    %218 = vmatpush2.msra.mxu0 0.0
    %219 = vmatprep.subr.mxu0 0.0
    %220 = vmatpush2.msra.mxu0 0.0
    %221 = vmatprep.mubr.f32.mxu0 0.0
    %222 = vmatmul.mubr.f32.gmra.mxu0 %v152
    %v223 = vpop.f32.mrf.mxu0
    %v224 = vadd.f32 %v156, %v223
    %v225 = vpop.f32.mrf.mxu0
    %226 = vdwg.mxu0
    %v227 = vmax.f32 %v224, 0.0
    %v228 = vlaneseq
    %v229 = vshrl.u32 %v228, 7
    %v230 = vsub.s32 2, %v229
    %v231 = vrot.slane %v73, %v230
    %232 = vmatprep.subr.mxu0 0.0
    %233 = vmatpush1.msra.mxu0 %v72
    %234 = vmatprep.subr.mxu0 0.0
    %235 = vmatpush1.msra.mxu0 %v71
    %236 = vmatprep.subr.mxu0 0.0
    %237 = vmatpush1.msra.mxu0 %v70
    %238 = vmatprep.subr.mxu0 0.0
    %239 = vmatpush1.msra.mxu0 %v69
    %240 = vmatprep.subr.mxu0 0.0
    %241 = vmatpush1.msra.mxu0 %v68
    %242 = vmatprep.subr.mxu0 0.0
    %243 = vmatpush1.msra.mxu0 %v67
    %244 = vmatprep.subr.mxu0 0.0
    %245 = vmatpush1.msra.mxu0 %v66
    %246 = vmatprep.subr.mxu0 0.0
    %247 = vmatpush1.msra.mxu0 %v65
    %248 = vmatprep.subr.mxu0 0.0
    %249 = vmatpush1.msra.mxu0 %v64
    %250 = vmatprep.subr.mxu0 0.0
    %251 = vmatpush1.msra.mxu0 %v63
    %252 = vmatprep.subr.mxu0 0.0
    %253 = vmatpush1.msra.mxu0 %v62
    %254 = vmatprep.subr.mxu0 0.0
    %255 = vmatpush1.msra.mxu0 %v61
    %256 = vmatprep.subr.mxu0 0.0
    %257 = vmatpush1.msra.mxu0 %v60
    %258 = vmatprep.subr.mxu0 0.0
    %259 = vmatpush1.msra.mxu0 %v59
    %260 = vmatprep.subr.mxu0 0.0
    %261 = vmatpush1.msra.mxu0 %v58
    %262 = vmatprep.subr.mxu0 0.0
    %263 = vmatpush1.msra.mxu0 %v57
    %264 = vmatprep.subr.mxu0 0.0
    %265 = vmatpush2.msra.mxu0 0.0
    %266 = vmatprep.subr.mxu0 0.0
    %267 = vmatpush2.msra.mxu0 0.0
    %268 = vmatprep.subr.mxu0 0.0
    %269 = vmatpush2.msra.mxu0 0.0
    %270 = vmatprep.subr.mxu0 0.0
    %271 = vmatpush2.msra.mxu0 0.0
    %272 = vmatprep.subr.mxu0 0.0
    %273 = vmatpush2.msra.mxu0 0.0
    %274 = vmatprep.subr.mxu0 0.0
    %275 = vmatpush2.msra.mxu0 0.0
    %276 = vmatprep.subr.mxu0 0.0
    %277 = vmatpush2.msra.mxu0 0.0
    %278 = vmatprep.subr.mxu0 0.0
    %279 = vmatpush2.msra.mxu0 0.0
    %280 = vmatprep.subr.mxu0 0.0
    %281 = vmatpush2.msra.mxu0 0.0
    %282 = vmatprep.subr.mxu0 0.0
    %283 = vmatpush2.msra.mxu0 0.0
    %284 = vmatprep.subr.mxu0 0.0
    %285 = vmatpush2.msra.mxu0 0.0
    %286 = vmatprep.subr.mxu0 0.0
    %287 = vmatpush2.msra.mxu0 0.0
    %288 = vmatprep.subr.mxu0 0.0
    %289 = vmatpush2.msra.mxu0 0.0
    %290 = vmatprep.subr.mxu0 0.0
    %291 = vmatpush2.msra.mxu0 0.0
    %292 = vmatprep.subr.mxu0 0.0
    %293 = vmatpush2.msra.mxu0 0.0
    %294 = vmatprep.subr.mxu0 0.0
    %295 = vmatpush2.msra.mxu0 0.0
    %296 = vmatprep.mubr.f32.mxu0 0.0
    %297 = vmatmul.mubr.f32.gmra.mxu0 %v227
    %v298 = vpop.f32.mrf.mxu0
    %v299 = vadd.f32 %v231, %v298
    %v300 = vpop.f32.mrf.mxu0
    %301 = vdwg.mxu0
    %v302 = vmax.f32 %v299, -20.0
    %v303 = vmin.f32 %v302, 2.0
    %v304 = vmul.f32 %v303, 1.442695
    %v305 = vpow.pop %v304
    %v306 = vtanh.pop %v299
    %v307 = vmul.f32 %v306, 0.0
    %v308 = vadd.f32 %v307, 1.0
    %v309 = vlaneseq
    %v310 = vand.u32 %v309, 127
    %vm311 = vcmp.lt.s32.totalorder %v310, 4
    %vm312 = vcmp.lt.s32.totalorder %v310, 8
    %vm313 = vcmp.lt.s32.totalorder %v310, 12
    %v314 = vsel %vm313, %v305, %v308
    %v315 = vsel %vm312, %v303, %v314
    %v316 = vsel %vm311, %v299, %v315
    %317 = vst [vmem:[#allocation7] sm:$0xff] %v316
    // Predicated region
    $region18: #{tpu_custom_call.1} parent=1 // pred_check
      _
    $region19: #{tpu_custom_call.1} parent=1 // pred_check_branch
      %319 = sbr.rel (0) target = $region21
    $region20: #{tpu_custom_call.1} parent=1 // pred_region
      %s321 = ssub.s32 128, 128
      %322 = vsyncadd [#allocation4], %s321
      %s324 = sshll.u32 [#allocation7], 4
      %s325 = int_to_ptr.vmem [resolvable:$true] %s324
      %327 = dma.vmem_to_hbm [thread:$0]  %s325, 128, %s2, [#allocation4]
    $region21: #{tpu_custom_call.1} parent=1 // pred_fallthru
      _
    // Predicated region
    $region22: #{tpu_custom_call.1} parent=1 // pred_check
      _
    $region23: #{tpu_custom_call.1} parent=1 // pred_check_branch
      %329 = sbr.rel (0) target = $region25
    $region24: #{tpu_custom_call.1} parent=1 // pred_region
      %330 = dma.done [#allocation4], 128
    $region25: #{tpu_custom_call.1} parent=1 // pred_fallthru
      _
    %331 = vsyncpa [#allocation3], 1
    %332 = vsyncpa [#allocation6], 1
    %333 = vsyncpa [#allocation4], 1

</llo_original>
